<compile_context>
chip_gen: v6e
topology: v6e:2x2x1
jax: 0.10.0
libtpu: 0.0.40
codegen_flags: <defaults>
</compile_context>

<pallas_src>
import functools

import jax
import jax.numpy as jnp
from jax.experimental import pallas as pl
from jax.experimental.pallas import tpu as pltpu


def _discriminator_kernel(emb_ref, o_ref, *, emb_dim):
    """One batch tile of || h + r - t ||_2.

    emb_ref: (tb, 3*emb_dim) VMEM block — full feature extent, lane-dense.
    o_ref  : (tb, 1) per-row L2 norms.
    """
    D = emb_dim
    h = emb_ref[:, :D]                 # static slices of the fused block
    r = emb_ref[:, D:2 * D]            # (zero-cost when D is 128-aligned)
    t = emb_ref[:, 2 * D:3 * D]
    d = h + r - t                                      # VPU elementwise
    ss = jnp.sum(d * d, axis=1, keepdims=True)         # XLU lane reduce
    o_ref[...] = jnp.sqrt(ss).astype(o_ref.dtype)


def _choose_tile_b(B, emb_dim, target_block_bytes=2 << 20):
    """Batch tile: ~2 MiB f32 blocks, 8-aligned, divides B, >=2 tiles when possible."""
    row_bytes = 3 * emb_dim * 4
    cap = max(8, min(B, target_block_bytes // row_bytes, 4096))
    tb = None
    for cand in range(int(cap), 7, -1):
        if B % cand == 0 and cand % 8 == 0:
            tb = cand
            break
    if tb is None:
        return B                        # tiny / odd batch: one full-batch block
    if tb == B and B % 16 == 0:
        tb = B // 2                     # >=2 batch tiles: pipelining + v7x megacore
    return tb


def discriminator_forward(emb, emb_dim, *, tile_b=None):
    """emb: (B, 3*emb_dim) float32  ->  (B,) float32  L2 norm of h + r - t."""
    B, F = emb.shape
    D = int(emb_dim)
    assert F == 3 * D, "emb must have 3 * emb_dim features"

    tb = int(tile_b) if tile_b is not None else _choose_tile_b(B, D)
    assert B % tb == 0, "tile_b must divide the batch"
    assert tb % 8 == 0 or tb == B, "tile_b must be 8-aligned or the full batch"
    grid = (B // tb,)

    # One contiguous (tb, 3D) block per step; last dim equals the full array
    # extent, so the layout rule is satisfied for any emb_dim.
    in_spec = pl.BlockSpec((tb, 3 * D), lambda b: (b, 0))
    out_spec = pl.BlockSpec((tb, 1), lambda b: (b, 0))

    in_block_bytes = tb * 3 * D * 4
    out_block_bytes = tb * 4
    vmem_limit = 2 * (in_block_bytes + out_block_bytes) + (4 << 20)
    vmem_limit = int(min(max(vmem_limit, 16 << 20), 96 << 20))

    out = pl.pallas_call(
        functools.partial(_discriminator_kernel, emb_dim=D),
        out_shape=jax.ShapeDtypeStruct((B, 1), jnp.float32),
        grid=grid,
        in_specs=[in_spec],
        out_specs=out_spec,
        compiler_params=pltpu.CompilerParams(
            dimension_semantics=("parallel",),
            vmem_limit_bytes=vmem_limit),
        cost_estimate=pl.CostEstimate(
            flops=4 * B * D,
            transcendentals=0,
            bytes_accessed=(3 * B * D + B) * 4),
    )(emb)
    return out[:, 0]


def reference_forward(emb, emb_dim):
    """Plain-JAX reference mirroring the PyTorch module."""
    h = emb[:, :emb_dim]
    r = emb[:, emb_dim:2 * emb_dim]
    t = emb[:, 2 * emb_dim:]
    d = h + r - t
    return jnp.sqrt(jnp.sum(d * d, axis=1))


if __name__ == "__main__":
    key = jax.random.PRNGKey(0)
    # Small, lane-dense demo shapes: (B=64, D=128) exercises a 2-tile batch
    # grid; (B=8, D=256) exercises the single-block (tb == B) path.
    for B, emb_dim in ((64, 128), (8, 256)):
        key, sub = jax.random.split(key)
        emb = jax.random.normal(sub, (B, 3 * emb_dim), dtype=jnp.float32)

        out = jax.block_until_ready(discriminator_forward(emb, emb_dim))
        ref = reference_forward(emb, emb_dim)

        assert out.shape == (B,)
        assert jnp.allclose(out, ref, atol=1e-4, rtol=1e-4), (
            f"mismatch vs reference for B={B}, emb_dim={emb_dim}")

    print("KERNEL_OK")
</pallas_src>

<mosaic_0001>
module attributes {stable_mosaic.version = 11 : i64} {
  func.func @_discriminator_kernel(%arg0: i32, %arg1: memref<32x384xf32, #tpu.memory_space<vmem>>, %arg2: memref<32x1xf32, #tpu.memory_space<vmem>>) attributes {dimension_semantics = [#tpu.dimension_semantics<parallel>], iteration_bounds = array<i64: 2>, scalar_prefetch = 0 : i64, scratch_operands = 0 : i64, tpu.core_type = #tpu.core_type<tc>, window_params = [{transform_indices = @transform_0, window_bounds = array<i64: 32, 384>}, {transform_indices = @transform_1, window_bounds = array<i64: 32, 1>}]} {
    %c0 = arith.constant 0 : index
    %c0_0 = arith.constant 0 : index
    %0 = vector.load %arg1[%c0, %c0_0] : memref<32x384xf32, #tpu.memory_space<vmem>>, vector<32x128xf32>
    %c0_1 = arith.constant 0 : index
    %c128 = arith.constant 128 : index
    %1 = vector.load %arg1[%c0_1, %c128] : memref<32x384xf32, #tpu.memory_space<vmem>>, vector<32x128xf32>
    %c0_2 = arith.constant 0 : index
    %c256 = arith.constant 256 : index
    %2 = vector.load %arg1[%c0_2, %c256] : memref<32x384xf32, #tpu.memory_space<vmem>>, vector<32x128xf32>
    %3 = arith.addf %0, %1 : vector<32x128xf32>
    %4 = arith.subf %3, %2 : vector<32x128xf32>
    %5 = arith.mulf %4, %4 : vector<32x128xf32>
    %cst = arith.constant dense<0.000000e+00> : vector<32xf32>
    %6 = vector.multi_reduction <add>, %5, %cst [1] : vector<32x128xf32> to vector<32xf32>
    %7 = vector.shape_cast %6 : vector<32xf32> to vector<32x1xf32>
    %8 = math.sqrt %7 : vector<32x1xf32>
    %c0_3 = arith.constant 0 : index
    %c0_4 = arith.constant 0 : index
    %9 = vector.load %arg2[%c0_3, %c0_4] : memref<32x1xf32, #tpu.memory_space<vmem>>, vector<32x1xf32>
    tpu.vector_store %arg2[%c0_3, %c0_4], %8 {strides = array<i32>} : memref<32x1xf32, #tpu.memory_space<vmem>>, vector<32x1xf32>,
    return
  }
  func.func @transform_0(%arg0: i32) -> (i32, i32) {
    %c0_i32 = arith.constant 0 : i32
    %c0_i32_0 = arith.constant 0 : i32
    return %arg0, %c0_i32 : i32, i32
  }
  func.func @transform_1(%arg0: i32) -> (i32, i32) {
    %c0_i32 = arith.constant 0 : i32
    %c0_i32_0 = arith.constant 0 : i32
    return %arg0, %c0_i32 : i32, i32
  }
}

</mosaic_0001>

<llo_original>
// kernel: tpu_custom_call.1
$region0: #{tpu_custom_call.1}
  #allocation0 [shape = 'u32[]', space=smem, size = 0x4, offset = 0x4, fixed_abs, tag = 'smem constant byte address 0x4 - core index']
  #allocation1 [shape = 'u32[144,128]{1,0:T(1,128)}', space=vmem, size = 0x12000, scoped, tag = 'internal scratch']
  %s0 = inlined_call_operand.hbm [shape: f32[64,384], index: 0, kind: input, shape index: {}]
  %s1 = inlined_call_operand.vmem [shape: f32[64,1], index: 1, kind: output, shape index: {}]
  %s2 = sld [smem:[#allocation0]]
  $region41: #{tpu_custom_call.1} parent=0
    _
  %s4 = ssub.s32 1, %s2
  %s5 = scalar_select 0, %s4, %s2
  $region1: #{tpu_custom_call.1} parent=0
    #allocation2 [shape = 'u8[98304]{0}', space=vmem, size = 0x18000, scoped, tag = 'input window, operand 0']
    #allocation3 [shape = 's32[2]{0}', space=sflag, size = 0x8, scoped, tag = 'scoped memory for tpu_custom_call.1']
    %6 = vsyncpa [#allocation3], 0
    %s7 = scalar_lea.sflag [#allocation3], 1
    %8 = vsyncpa %s7, 0
    loop: start=0, step=1, limit=4
    $region2: #{tpu_custom_call.1} parent=1 // loop_pre_header
      _
    $region3: #{tpu_custom_call.1} parent=1 // loop_header
      %s10 = sphi 0, %s14
      %p11 = scmp.ge.s32.totalorder %s10, 4
      %s20 = sphi 0, %s22
      %s23 = sphi 0, %s20
      %s24 = sphi 0, %s23
      %s40 = sphi 0, %s24
      %s46 = sphi 0, %s48
      %s49 = sphi 0, %s46
      %s50 = sphi 0, %s49
      %s66 = sphi 0, %s50
    $region4: #{tpu_custom_call.1} parent=1 // loop_header_branch
      %13 = sbr.rel (%p11) target = $region8
    $region5: #{tpu_custom_call.1} parent=1 // loop_body
      %s15 = ssub.s32 %s10, 1
      %s16 = ssub.s32 %s10, 2
      %s17 = sadd.s32 %s10, 1
      %s18 = ssub.s32 %s10, %s17
      %p19 = scmp.eq.s32.totalorder %s18, 0
      %s21 = sadd.s32 %s20, 1
      %s22 = scalar_select %p19, %s20, %s21
      %p25 = pneg %p19
      %p26 = scmp.eq.s32.totalorder %s10, 1
      %p27 = por %p25, %p26
      %p28 = scmp.ne.s32.totalorder %s20, %s23
      %p29 = scmp.eq.s32.totalorder %s10, 0
      %p30 = por %p28, %p29
      %p31 = scmp.ne.s32.totalorder %s20, %s23
      %p32 = scmp.eq.s32.totalorder %s15, 1
      %p33 = por %p31, %p32
      %p34 = scmp.ne.s32.totalorder %s23, %s24
      %p35 = scmp.eq.s32.totalorder %s15, 0
      %p36 = por %p34, %p35
      %p37 = scmp.ne.s32.totalorder %s23, %s24
      %p38 = scmp.eq.s32.totalorder %s16, 1
      %p39 = por %p37, %p38
      %p41 = scmp.ne.s32.totalorder %s24, %s40
      %p42 = scmp.eq.s32.totalorder %s16, 0
      %p43 = por %p41, %p42
      %s44 = ssub.s32 %s10, %s17
      %p45 = scmp.eq.s32.totalorder %s44, 0
      %s47 = sadd.s32 %s46, 1
      %s48 = scalar_select %p45, %s46, %s47
      %p51 = pneg %p45
      %p52 = scmp.eq.s32.totalorder %s10, 1
      %p53 = por %p51, %p52
      %p54 = scmp.ne.s32.totalorder %s46, %s49
      %p55 = scmp.eq.s32.totalorder %s10, 0
      %p56 = por %p54, %p55
      %p57 = scmp.ne.s32.totalorder %s46, %s49
      %p58 = scmp.eq.s32.totalorder %s15, 1
      %p59 = por %p57, %p58
      %p60 = scmp.ne.s32.totalorder %s49, %s50
      %p61 = scmp.eq.s32.totalorder %s15, 0
      %p62 = por %p60, %p61
      %p63 = scmp.ne.s32.totalorder %s49, %s50
      %p64 = scmp.eq.s32.totalorder %s16, 1
      %p65 = por %p63, %p64
      %p67 = scmp.ne.s32.totalorder %s50, %s66
      %p68 = scmp.eq.s32.totalorder %s16, 0
      %p69 = por %p67, %p68
      %p70 = scmp.le.s32.totalorder 1, %s10
      %p71 = scmp.lt.s32.totalorder %s10, 3
      %p72 = pnand %p70, %p71
      %p73 = pneg %p72
      // Predicated region
      $region9: #{tpu_custom_call.1} parent=5 // pred_check
        _
      $region10: #{tpu_custom_call.1} parent=5 // pred_check_branch
        %75 = sbr.rel (%p72) target = $region12
      $region11: #{tpu_custom_call.1} parent=5 // pred_region
        %s76 = ssub.s32 %s10, 1
      $region12: #{tpu_custom_call.1} parent=5 // pred_fallthru
        _
      %p77 = scmp.lt.s32.totalorder %s10, 2
      // Predicated region
      $region13: #{tpu_custom_call.1} parent=5 // pred_check
        %p78 = pneg %p77
      $region14: #{tpu_custom_call.1} parent=5 // pred_check_branch
        %80 = sbr.rel (%p78) target = $region16
      $region15: #{tpu_custom_call.1} parent=5 // pred_region
        // Predicated region
        $region17: #{tpu_custom_call.1} parent=15 // pred_check
          %p81 = pneg %p30
        $region18: #{tpu_custom_call.1} parent=15 // pred_check_branch
          %83 = sbr.rel (%p81) target = $region20
        $region19: #{tpu_custom_call.1} parent=15 // pred_region
          %s84 = sand.u32 %s20, 1
          %s85 = scalar_lea.sflag [#allocation3], %s84
          %s86 = sand.u32 %s20, 1
          %s87 = smul.addr %s86, 96
          %s88 = scalar_lea.vmem [#allocation2], %s87
          %s89 = smul.u32 4, %s10
          %s91 = ssub.s32 1536, 1536
          %92 = vsyncadd %s85, %s91
          %s93 = smul.addr %s89, 3
          %s94 = smul.addr %s93, 128
          %s95 = scalar_lea.hbm %s0, %s94
          %s96 = sshll.u32 %s88, 4
          %s97 = int_to_ptr.vmem [resolvable:$true] %s96
          %102 = dma.hbm_to_vmem [thread:$0]  %s95, 1536, %s97, %s85, 384, 384, 24
        $region20: #{tpu_custom_call.1} parent=15 // pred_fallthru
          _
      $region16: #{tpu_custom_call.1} parent=5 // pred_fallthru
        _
      %p103 = scmp.le.s32.totalorder 1, %s10
      %p104 = scmp.lt.s32.totalorder %s10, 3
      %p105 = pnand %p103, %p104
      %p106 = pneg %p105
      // Predicated region
      $region21: #{tpu_custom_call.1} parent=5 // pred_check
        _
      $region22: #{tpu_custom_call.1} parent=5 // pred_check_branch
        %108 = sbr.rel (%p105) target = $region24
      $region23: #{tpu_custom_call.1} parent=5 // pred_region
        %s109 = ssub.s32 %s10, 1
        %s110 = sand.u32 %s23, 1
        %s111 = scalar_lea.sflag [#allocation3], %s110
        %s112 = sand.u32 %s23, 1
        %s113 = smul.addr %s112, 96
        %s114 = scalar_lea.vmem [#allocation2], %s113
        // Predicated region
        $region25: #{tpu_custom_call.1} parent=23 // pred_check
          %p115 = pneg %p36
        $region26: #{tpu_custom_call.1} parent=23 // pred_check_branch
          %117 = sbr.rel (%p115) target = $region28
        $region27: #{tpu_custom_call.1} parent=23 // pred_region
          %118 = dma.done %s111, 1536
        $region28: #{tpu_custom_call.1} parent=23 // pred_fallthru
          _
        %s119 = sand.u32 %s23, 1
        %s120 = scalar_lea.sflag [#allocation3], %s119
        %s121 = sand.u32 %s23, 1
        %s122 = smul.addr %s121, 96
        %s123 = scalar_lea.vmem [#allocation2], %s122
        %p124 = pneg %p36
        %p125 = pneg %p33
        %p126 = pneg %p62
        %p127 = pneg %p59
        %s128 = smul.u32 4, %s15
        %p129 = scmp.lt.s32.totalorder %s128, 7
        %s130 = scalar_select %p129, %s128, 7
        %s131 = smul.addr %s130, 8
        %s132 = scalar_lea.vmem %s1, %s131
        %s133 = smul.u32 4, %s15
        %s134 = smul.u32 4, %s15
        %p135 = scmp.lt.s32.totalorder %s134, 7
        %s136 = scalar_select %p135, %s134, 7
        %s137 = smul.addr %s136, 8
        %s138 = scalar_lea.vmem %s1, %s137
        %s139 = smul.u32 4, %s15
        %v140 = vld [vmem:[%s114] sm:$0xff]
        %v141 = vld [vmem:[%s114 + $0x18] sm:$0xff]
        %v142 = vld [vmem:[%s114 + $0x30] sm:$0xff]
        %v143 = vld [vmem:[%s114 + $0x48] sm:$0xff]
        %v144 = vld [vmem:[%s114 + $0x8] sm:$0xff]
        %v145 = vld [vmem:[%s114 + $0x20] sm:$0xff]
        %v146 = vld [vmem:[%s114 + $0x38] sm:$0xff]
        %v147 = vld [vmem:[%s114 + $0x50] sm:$0xff]
        %v148 = vld [vmem:[%s114 + $0x10] sm:$0xff]
        %v149 = vld [vmem:[%s114 + $0x28] sm:$0xff]
        %v150 = vld [vmem:[%s114 + $0x40] sm:$0xff]
        %v151 = vld [vmem:[%s114 + $0x58] sm:$0xff]
        %v152 = vadd.f32 %v140, %v144
        %v153 = vadd.f32 %v141, %v145
        %v154 = vadd.f32 %v142, %v146
        %v155 = vadd.f32 %v143, %v147
        %v156 = vsub.f32 %v152, %v148
        %v157 = vsub.f32 %v153, %v149
        %v158 = vsub.f32 %v154, %v150
        %v159 = vsub.f32 %v155, %v151
        %v160 = vmul.f32 %v156, %v156
        %v161 = vmul.f32 %v157, %v157
        %v162 = vmul.f32 %v158, %v158
        %v163 = vmul.f32 %v159, %v159
        %164 = vadd.xlane.f32.xlu0 %v160
        %v165 = vpop.xlane.xlu0 %164
        %166 = vadd.xlane.f32.xlu0 %v161
        %v167 = vpop.xlane.xlu0 %166
        %168 = vadd.xlane.f32.xlu0 %v162
        %v169 = vpop.xlane.xlu0 %168
        %170 = vadd.xlane.f32.xlu0 %v163
        %v171 = vpop.xlane.xlu0 %170
        %v172 = vrsqrt.pop %v165
        %v173 = vmul.f32 %v165, %v172
        %vm174 = vcmp.eq.f32.partialorder %v165, inf
        %v175 = vsel %vm174, %v165, %v173
        %vm176 = vcmp.eq.f32.partialorder %v165, 0.0
        %v177 = vand.u32 %v165, 2147483648
        %v178 = vsel %vm176, %v177, %v175
        %v179 = vrsqrt.pop %v167
        %v180 = vmul.f32 %v167, %v179
        %vm181 = vcmp.eq.f32.partialorder %v167, inf
        %v182 = vsel %vm181, %v167, %v180
        %vm183 = vcmp.eq.f32.partialorder %v167, 0.0
        %v184 = vand.u32 %v167, 2147483648
        %v185 = vsel %vm183, %v184, %v182
        %v186 = vrsqrt.pop %v169
        %v187 = vmul.f32 %v169, %v186
        %vm188 = vcmp.eq.f32.partialorder %v169, inf
        %v189 = vsel %vm188, %v169, %v187
        %vm190 = vcmp.eq.f32.partialorder %v169, 0.0
        %v191 = vand.u32 %v169, 2147483648
        %v192 = vsel %vm190, %v191, %v189
        %v193 = vrsqrt.pop %v171
        %v194 = vmul.f32 %v171, %v193
        %vm195 = vcmp.eq.f32.partialorder %v171, inf
        %v196 = vsel %vm195, %v171, %v194
        %vm197 = vcmp.eq.f32.partialorder %v171, 0.0
        %v198 = vand.u32 %v171, 2147483648
        %v199 = vsel %vm197, %v198, %v196
        %vm200 = vcmask 7168
        %201 = vst.msk [vmem:[%s138] sm:$0xff] %vm200, %v178
        %202 = vst.msk [vmem:[%s138 + $0x8] sm:$0xff] %vm200, %v185
        %203 = vst.msk [vmem:[%s138 + $0x10] sm:$0xff] %vm200, %v192
        %204 = vst.msk [vmem:[%s138 + $0x18] sm:$0xff] %vm200, %v199
        %s205 = smul.u32 4, %s15
        %p206 = scmp.lt.s32.totalorder %s205, 7
        %s207 = scalar_select %p206, %s205, 7
        %s208 = smul.addr %s207, 8
        %s209 = scalar_lea.vmem %s1, %s208
        // Predicated region
        $region29: #{tpu_custom_call.1} parent=23 // pred_check
          %p210 = pneg %p59
        $region30: #{tpu_custom_call.1} parent=23 // pred_check_branch
          %212 = sbr.rel (%p210) target = $region32
        $region31: #{tpu_custom_call.1} parent=23 // pred_region
          %s213 = smul.u32 4, %s15
        $region32: #{tpu_custom_call.1} parent=23 // pred_fallthru
          _
      $region24: #{tpu_custom_call.1} parent=5 // pred_fallthru
        _
      %p214 = scmp.le.s32.totalorder 2, %s10
      // Predicated region
      $region33: #{tpu_custom_call.1} parent=5 // pred_check
        %p215 = pneg %p214
      $region34: #{tpu_custom_call.1} parent=5 // pred_check_branch
        %217 = sbr.rel (%p215) target = $region36
      $region35: #{tpu_custom_call.1} parent=5 // pred_region
        %s218 = ssub.s32 %s10, 2
        // Predicated region
        $region37: #{tpu_custom_call.1} parent=35 // pred_check
          %p219 = pneg %p65
        $region38: #{tpu_custom_call.1} parent=35 // pred_check_branch
          %221 = sbr.rel (%p219) target = $region40
        $region39: #{tpu_custom_call.1} parent=35 // pred_region
          %s222 = smul.u32 4, %s16
          %p223 = scmp.lt.s32.totalorder %s222, 7
          %s224 = scalar_select %p223, %s222, 7
          %s225 = smul.addr %s224, 8
          %s226 = scalar_lea.vmem %s1, %s225
        $region40: #{tpu_custom_call.1} parent=35 // pred_fallthru
          _
      $region36: #{tpu_custom_call.1} parent=5 // pred_fallthru
        _
    $region6: #{tpu_custom_call.1} parent=1 // loop_footer
      %s14 = sadd.s32 1, %s10
    $region7: #{tpu_custom_call.1} parent=1 // loop_footer_branch
      %9 = sbr.rel target = $region3
    $region8: #{tpu_custom_call.1} parent=1 // loop_exit
      _
    %227 = vsyncpa [#allocation3], 1
    %s228 = scalar_lea.sflag [#allocation3], 1
    %229 = vsyncpa %s228, 1

</llo_original>
